<compile_context>
chip_gen: v6e
topology: v6e:2x2x1
jax: 0.10.0
libtpu: 0.0.40
codegen_flags: <defaults>
</compile_context>

<pallas_src>
import jax
import jax.numpy as jnp
import numpy as np
from jax.experimental import pallas as pl
from jax.experimental.pallas import tpu as pltpu


# Tap mapping for stride=2, kernel=4, padding=1 transposed conv.
# For output row oy = 2*i + p the contributing kernel rows ky and the row offset
# into the (pad=1) zero-padded input are:
#   p=0: (ky=1, sy=1), (ky=3, sy=0)      p=1: (ky=0, sy=2), (ky=2, sy=1)
# (same mapping applies along x with q / kx / sx).
_TAPS = {0: ((1, 1), (3, 0)), 1: ((0, 2), (2, 1))}


def upsample_block_kernel(x_ref, w_ref, shift_ref, o_ref):
    """One (batch element, row-tile) grid step.

    x_ref:     (1, 1, th+2, W+2, Cin)  zero-padded NHWC input rows (incl. halo)
    w_ref:     (3*Cin, 8*Cout)         tap-folded weights (BN scale folded in);
                                       rows ordered (sx, ci), cols (ky, q, co)
    shift_ref: (1, 1, 2*Cout)          folded BN shift, tiled over q
    o_ref:     (1, th, 2, W, 2*Cout)   output, dims (n, i, p, j, (q, co))
    """
    _, th, _, W, two_cout = o_ref.shape
    cin = x_ref.shape[-1]

    x = x_ref[0, 0]                                   # (th+2, W+2, Cin)

    # x-only im2col: 3 shifted column slices concatenated on channels (sx, ci).
    # Only 3 small (Cin-wide) relayouts instead of 16 full-size slab relayouts.
    xcol = jnp.concatenate([x[:, sx:sx + W, :] for sx in range(3)], axis=-1)
    xcol = xcol.reshape((th + 2) * W, 3 * cin)        # free: W is a mult. of 8

    # ONE wide MXU matmul: all 4 ky taps x both x-parities at once, f32 accumulate.
    r = jnp.dot(xcol, w_ref[...], preferred_element_type=jnp.float32)
    r = r.reshape(th + 2, W, 4 * two_cout)            # (padded row, j, (ky, q, co))

    def tap(ky, row0):
        # row slices are on the leading dim (free); ky slices are lane slices,
        # 128-aligned whenever Cout is a multiple of 64.
        return r[row0:row0 + th, :, ky * two_cout:(ky + 1) * two_cout]

    shift = shift_ref[0].astype(jnp.float32)          # (1, 2*Cout), broadcasts

    # Row-parity combination (shift-adds on the VPU) + BN shift + ReLU epilogue.
    y0 = jnp.maximum(tap(1, 1) + tap(3, 0) + shift, 0.0)   # p = 0
    y1 = jnp.maximum(tap(0, 2) + tap(2, 1) + shift, 0.0)   # p = 1
    o_ref[0, :, 0, :, :] = y0.astype(o_ref.dtype)
    o_ref[0, :, 1, :, :] = y1.astype(o_ref.dtype)
    # TODO(synk): Dropout2d is identity in eval mode; training-mode channel dropout
    # and training-mode BatchNorm batch statistics are not implemented.


def _pick_tile_h(H, W, Cin, Cout, budget_bytes=8 * 2**20):
    """Largest divisor of H whose per-tile VMEM footprint fits the budget (f32)."""
    best = 1
    for th in range(1, H + 1):
        if H % th:
            continue
        est = 4 * (
            2 * (th + 2) * (W + 2) * Cin        # double-buffered input block
            + 4 * (th + 2) * W * Cin            # xcol + slack
            + (th + 2) * W * 8 * Cout           # f32 matmul result r
            + 2 * th * W * 4 * Cout             # double-buffered output block
        )
        if est <= budget_bytes:
            best = th
    return best


def upsample_block(x_nchw, w_iohw, gamma=None, beta=None, running_mean=None,
                   running_var=None, eps=1e-5, norm=True, th=None,
                   compute_dtype=jnp.float32):
    """UpsampleBlock forward (eval semantics). PyTorch-facing NCHW in/out, f32."""
    N, Cin, H, W = x_nchw.shape
    Cout = w_iohw.shape[1]

    if th is None:
        th = _pick_tile_h(H, W, Cin, Cout)
    assert H % th == 0, (H, th)
    n_th = H // th

    # --- glue: NCHW -> NHWC, zero-pad, halo-replicated row tiles (cheap: input is
    #     the smallest tensor); everything downstream is pipelined by BlockSpecs.
    x_nhwc = jnp.transpose(x_nchw, (0, 2, 3, 1))
    xp = jnp.pad(x_nhwc, ((0, 0), (1, 1), (1, 1), (0, 0)))
    rows = jnp.arange(n_th)[:, None] * th + jnp.arange(th + 2)[None, :]
    xt = xp[:, rows].astype(compute_dtype)            # (N, n_th, th+2, W+2, Cin)

    # --- fold BatchNorm (eval) into a per-channel scale (into W) and shift.
    if norm:
        inv_std = gamma / jnp.sqrt(running_var + eps)
        scale = inv_std.astype(jnp.float32)
        shift = (beta - running_mean * inv_std).astype(jnp.float32)
    else:
        scale = jnp.ones((Cout,), jnp.float32)
        shift = jnp.zeros((Cout,), jnp.float32)

    # --- tap-folded weight: (3*Cin, 8*Cout); rows (sx, ci), cols (ky, q, co).
    w_k = jnp.transpose(w_iohw, (2, 3, 0, 1)).astype(jnp.float32)   # (ky, kx, ci, co)
    w_k = w_k * scale[None, None, None, :]                          # fold BN scale
    wbig = jnp.zeros((3, Cin, 4, 2, Cout), jnp.float32)
    for q in (0, 1):
        for kx, sx in _TAPS[q]:
            wbig = wbig.at[sx, :, :, q, :].set(jnp.transpose(w_k[:, kx], (1, 0, 2)))
    wbig = wbig.reshape(3 * Cin, 8 * Cout).astype(compute_dtype)

    shift2 = jnp.tile(shift, 2).reshape(1, 1, 2 * Cout)             # (q, co) order

    out = pl.pallas_call(
        upsample_block_kernel,
        out_shape=jax.ShapeDtypeStruct((N, H, 2, W, 2 * Cout), jnp.float32),
        grid_spec=pltpu.PrefetchScalarGridSpec(
            num_scalar_prefetch=0,
            grid=(N, n_th),
            in_specs=[
                pl.BlockSpec((1, 1, th + 2, W + 2, Cin),
                             lambda n, i: (n, i, 0, 0, 0)),
                pl.BlockSpec((3 * Cin, 8 * Cout), lambda n, i: (0, 0)),
                pl.BlockSpec((1, 1, 2 * Cout), lambda n, i: (0, 0, 0)),
            ],
            out_specs=pl.BlockSpec((1, th, 2, W, 2 * Cout),
                                   lambda n, i: (n, i, 0, 0, 0)),
        ),
        compiler_params=pltpu.CompilerParams(
            dimension_semantics=("parallel", "parallel"),   # 2-TC sharding on v7x
            vmem_limit_bytes=32 * 1024 * 1024,
        ),
    )(xt, wbig, shift2)

    # --- glue: (n, i, p, j, (q, co)) is already interleaved NHWC up to a PURE
    #     reshape; only the unavoidable NHWC -> NCHW transpose remains.
    out_nhwc = out.reshape(N, 2 * H, 2 * W, Cout)
    return jnp.transpose(out_nhwc, (0, 3, 1, 2))


def reference(x, w, gamma, beta, rm, rv, eps=1e-5):
    """Pure-JAX reference: ConvTranspose2d(k=4,s=2,p=1) + BN(eval) + ReLU, NCHW."""
    w_rev = w[:, :, ::-1, ::-1]
    y = jax.lax.conv_general_dilated(
        x.astype(jnp.float32), w_rev.astype(jnp.float32),
        window_strides=(1, 1), padding=((2, 2), (2, 2)),
        lhs_dilation=(2, 2), rhs_dilation=(1, 1),
        dimension_numbers=('NCHW', 'IOHW', 'NCHW'))
    inv_std = gamma / jnp.sqrt(rv + eps)
    scale = inv_std.reshape(1, -1, 1, 1)
    shift = (beta - rm * inv_std).reshape(1, -1, 1, 1)
    return jnp.maximum(y * scale + shift, 0.0)


if __name__ == "__main__":
    key = jax.random.PRNGKey(0)
    k_x, k_w, k_g, k_b, k_m, k_v = jax.random.split(key, 6)

    N, Cin, Cout, H, W = 2, 4, 8, 16, 16

    x = jax.random.normal(k_x, (N, Cin, H, W), dtype=jnp.float32)
    # ConvTranspose2d weight layout in PyTorch: (in_channels, out_channels, kH, kW)
    w = 0.1 * jax.random.normal(k_w, (Cin, Cout, 4, 4), dtype=jnp.float32)
    gamma = jax.random.uniform(k_g, (Cout,), jnp.float32, 0.5, 1.5)
    beta = 0.1 * jax.random.normal(k_b, (Cout,), dtype=jnp.float32)
    running_mean = 0.1 * jax.random.normal(k_m, (Cout,), dtype=jnp.float32)
    running_var = jax.random.uniform(k_v, (Cout,), jnp.float32, 0.5, 1.5)

    # th=8 -> grid (N=2, n_th=2): exercises both grid axes / the halo tiling.
    out = upsample_block(x, w, gamma, beta, running_mean, running_var, th=8)
    out = jax.block_until_ready(out)

    ref = jax.block_until_ready(reference(x, w, gamma, beta, running_mean, running_var))
    assert out.shape == (N, Cout, 2 * H, 2 * W), out.shape
    np.testing.assert_allclose(np.asarray(out), np.asarray(ref), rtol=1e-4, atol=1e-4)

    print("KERNEL_OK")
</pallas_src>

<mosaic_0001>
module attributes {stable_mosaic.version = 11 : i64} {
  func.func @upsample_block_kernel(%arg0: i32, %arg1: i32, %arg2: memref<1x1x10x18x4xf32, #tpu.memory_space<vmem>>, %arg3: memref<12x64xf32, #tpu.memory_space<vmem>>, %arg4: memref<1x1x16xf32, #tpu.memory_space<vmem>>, %arg5: memref<1x8x2x16x16xf32, #tpu.memory_space<vmem>>) attributes {dimension_semantics = [#tpu.dimension_semantics<parallel>, #tpu.dimension_semantics<parallel>], iteration_bounds = array<i64: 2, 2>, scalar_prefetch = 0 : i64, scratch_operands = 0 : i64, tpu.core_type = #tpu.core_type<tc>, window_params = [{transform_indices = @transform_0, window_bounds = array<i64: 1, 1, 10, 18, 4>}, {pipeline_mode = #tpu.pipeline_mode<synchronous>, transform_indices = @transform_1, window_bounds = array<i64: 12, 64>}, {pipeline_mode = #tpu.pipeline_mode<synchronous>, transform_indices = @transform_2, window_bounds = array<i64: 1, 1, 16>}, {transform_indices = @transform_3, window_bounds = array<i64: 1, 8, 2, 16, 16>}]} {
    %c0 = arith.constant 0 : index
    %c0_0 = arith.constant 0 : index
    %c0_1 = arith.constant 0 : index
    %c0_2 = arith.constant 0 : index
    %c0_3 = arith.constant 0 : index
    %0 = vector.load %arg2[%c0, %c0_0, %c0_1, %c0_2, %c0_3] : memref<1x1x10x18x4xf32, #tpu.memory_space<vmem>>, vector<1x1x10x18x4xf32>
    %1 = vector.shape_cast %0 : vector<1x1x10x18x4xf32> to vector<10x18x4xf32>
    %2 = vector.extract_strided_slice %1 {offsets = [0, 0, 0], sizes = [10, 16, 4], strides = [1, 1, 1]} : vector<10x18x4xf32> to vector<10x16x4xf32>
    %3 = vector.extract_strided_slice %1 {offsets = [0, 1, 0], sizes = [10, 16, 4], strides = [1, 1, 1]} : vector<10x18x4xf32> to vector<10x16x4xf32>
    %4 = vector.extract_strided_slice %1 {offsets = [0, 2, 0], sizes = [10, 16, 4], strides = [1, 1, 1]} : vector<10x18x4xf32> to vector<10x16x4xf32>
    %5 = tpu.concatenate %2, %3, %4 in 2 : vector<10x16x4xf32>, vector<10x16x4xf32>, vector<10x16x4xf32> -> vector<10x16x12xf32>
    %6 = vector.shape_cast %5 : vector<10x16x12xf32> to vector<160x12xf32>
    %c0_4 = arith.constant 0 : index
    %c0_5 = arith.constant 0 : index
    %7 = vector.load %arg3[%c0_4, %c0_5] : memref<12x64xf32, #tpu.memory_space<vmem>>, vector<12x64xf32>
    %cst = arith.constant dense<0.000000e+00> : vector<160x64xf32>
    %8 = tpu.matmul %6, %7, %cst {dimension_numbers = #tpu.dot_dimension_numbers<[1], [0], [0], [1], [0, 0, 1, 1], [], []>} : vector<160x12xf32>, vector<12x64xf32>, vector<160x64xf32> -> vector<160x64xf32>
    %9 = vector.shape_cast %8 : vector<160x64xf32> to vector<10x16x64xf32>
    %c0_6 = arith.constant 0 : index
    %c0_7 = arith.constant 0 : index
    %c0_8 = arith.constant 0 : index
    %10 = vector.load %arg4[%c0_6, %c0_7, %c0_8] : memref<1x1x16xf32, #tpu.memory_space<vmem>>, vector<1x1x16xf32>
    %11 = vector.shape_cast %10 : vector<1x1x16xf32> to vector<1x16xf32>
    %12 = vector.extract_strided_slice %9 {offsets = [1, 0, 16], sizes = [8, 16, 16], strides = [1, 1, 1]} : vector<10x16x64xf32> to vector<8x16x16xf32>
    %13 = vector.extract_strided_slice %9 {offsets = [0, 0, 48], sizes = [8, 16, 16], strides = [1, 1, 1]} : vector<10x16x64xf32> to vector<8x16x16xf32>
    %14 = arith.addf %12, %13 : vector<8x16x16xf32>
    %15 = vector.shape_cast %11 : vector<1x16xf32> to vector<1x1x16xf32>
    %16 = vector.broadcast %15 : vector<1x1x16xf32> to vector<8x16x16xf32>
    %17 = arith.addf %14, %16 : vector<8x16x16xf32>
    %cst_9 = arith.constant 0.000000e+00 : f32
    %18 = vector.broadcast %cst_9 : f32 to vector<8x16x16xf32>
    %19 = arith.maximumf %17, %18 : vector<8x16x16xf32>
    %20 = vector.extract_strided_slice %9 {offsets = [2, 0, 0], sizes = [8, 16, 16], strides = [1, 1, 1]} : vector<10x16x64xf32> to vector<8x16x16xf32>
    %21 = vector.extract_strided_slice %9 {offsets = [1, 0, 32], sizes = [8, 16, 16], strides = [1, 1, 1]} : vector<10x16x64xf32> to vector<8x16x16xf32>
    %22 = arith.addf %20, %21 : vector<8x16x16xf32>
    %23 = vector.shape_cast %11 : vector<1x16xf32> to vector<1x1x16xf32>
    %24 = vector.broadcast %23 : vector<1x1x16xf32> to vector<8x16x16xf32>
    %25 = arith.addf %22, %24 : vector<8x16x16xf32>
    %cst_10 = arith.constant 0.000000e+00 : f32
    %26 = vector.broadcast %cst_10 : f32 to vector<8x16x16xf32>
    %27 = arith.maximumf %25, %26 : vector<8x16x16xf32>
    %c0_11 = arith.constant 0 : index
    %c0_12 = arith.constant 0 : index
    %c0_13 = arith.constant 0 : index
    %c0_14 = arith.constant 0 : index
    %c0_15 = arith.constant 0 : index
    %28 = vector.load %arg5[%c0_11, %c0_12, %c0_13, %c0_14, %c0_15] : memref<1x8x2x16x16xf32, #tpu.memory_space<vmem>>, vector<1x8x1x16x16xf32>
    %29 = vector.shape_cast %28 : vector<1x8x1x16x16xf32> to vector<8x16x16xf32>
    %30 = vector.shape_cast %19 : vector<8x16x16xf32> to vector<1x8x1x16x16xf32>
    tpu.vector_store %arg5[%c0_11, %c0_12, %c0_13, %c0_14, %c0_15], %30 {strides = array<i32>} : memref<1x8x2x16x16xf32, #tpu.memory_space<vmem>>, vector<1x8x1x16x16xf32>,
    %c0_16 = arith.constant 0 : index
    %c0_17 = arith.constant 0 : index
    %c1 = arith.constant 1 : index
    %c0_18 = arith.constant 0 : index
    %c0_19 = arith.constant 0 : index
    %31 = vector.load %arg5[%c0_16, %c0_17, %c1, %c0_18, %c0_19] : memref<1x8x2x16x16xf32, #tpu.memory_space<vmem>>, vector<1x8x1x16x16xf32>
    %32 = vector.shape_cast %31 : vector<1x8x1x16x16xf32> to vector<8x16x16xf32>
    %33 = vector.shape_cast %27 : vector<8x16x16xf32> to vector<1x8x1x16x16xf32>
    tpu.vector_store %arg5[%c0_16, %c0_17, %c1, %c0_18, %c0_19], %33 {strides = array<i32>} : memref<1x8x2x16x16xf32, #tpu.memory_space<vmem>>, vector<1x8x1x16x16xf32>,
    return
  }
  func.func @transform_0(%arg0: i32, %arg1: i32) -> (i32, i32, i32, i32, i32) {
    %c0_i32 = arith.constant 0 : i32
    %c0_i32_0 = arith.constant 0 : i32
    %c0_i32_1 = arith.constant 0 : i32
    %c0_i32_2 = arith.constant 0 : i32
    return %arg0, %arg1, %c0_i32, %c0_i32_0, %c0_i32_1 : i32, i32, i32, i32, i32
  }
  func.func @transform_1(%arg0: i32, %arg1: i32) -> (i32, i32) {
    %c0_i32 = arith.constant 0 : i32
    %c0_i32_0 = arith.constant 0 : i32
    %c0_i32_1 = arith.constant 0 : i32
    return %c0_i32, %c0_i32_0 : i32, i32
  }
  func.func @transform_2(%arg0: i32, %arg1: i32) -> (i32, i32, i32) {
    %c0_i32 = arith.constant 0 : i32
    %c0_i32_0 = arith.constant 0 : i32
    %c0_i32_1 = arith.constant 0 : i32
    %c0_i32_2 = arith.constant 0 : i32
    return %c0_i32, %c0_i32_0, %c0_i32_1 : i32, i32, i32
  }
  func.func @transform_3(%arg0: i32, %arg1: i32) -> (i32, i32, i32, i32, i32) {
    %c0_i32 = arith.constant 0 : i32
    %c0_i32_0 = arith.constant 0 : i32
    %c0_i32_1 = arith.constant 0 : i32
    %c0_i32_2 = arith.constant 0 : i32
    return %arg0, %arg1, %c0_i32, %c0_i32_0, %c0_i32_1 : i32, i32, i32, i32, i32
  }
}

</mosaic_0001>

<llo_original>
// kernel: tpu_custom_call.1
$region0: #{tpu_custom_call.1}
  #allocation0 [shape = 'u32[]', space=smem, size = 0x4, offset = 0x4, fixed_abs, tag = 'smem constant byte address 0x4 - core index']
  #allocation1 [shape = 'u32[144,128]{1,0:T(1,128)}', space=vmem, size = 0x12000, scoped, tag = 'internal scratch']
  %s0 = inlined_call_operand.vmem [shape: f32[2,2,10,18,4], index: 0, kind: input, shape index: {}]
  %s1 = inlined_call_operand.vmem [shape: f32[12,64], index: 1, kind: input, shape index: {}]
  %s2 = inlined_call_operand.vmem [shape: f32[1,1,16], index: 2, kind: input, shape index: {}]
  %s3 = inlined_call_operand.hbm [shape: f32[2,16,2,16,16], index: 3, kind: output, shape index: {}]
  %s4 = sld [smem:[#allocation0]]
  $region45: #{tpu_custom_call.1} parent=0
    _
  %s6 = ssub.s32 1, %s4
  %s7 = scalar_select 0, %s6, %s4
  $region1: #{tpu_custom_call.1} parent=0
    #allocation2 [shape = 'u8[262144]{0}', space=vmem, size = 0x40000, scoped, tag = 'output window, operand 0']
    #allocation3 [shape = 's32[2]{0}', space=sflag, size = 0x8, scoped, tag = 'scoped memory for tpu_custom_call.1']
    %8 = vsyncpa [#allocation3], 0
    %s9 = scalar_lea.sflag [#allocation3], 1
    %10 = vsyncpa %s9, 0
    loop: start=0, step=1, limit=6
    $region2: #{tpu_custom_call.1} parent=1 // loop_pre_header
      _
    $region3: #{tpu_custom_call.1} parent=1 // loop_header
      %s12 = sphi 0, %s16
      %p13 = scmp.ge.s32.totalorder %s12, 6
      %s19 = sphi 0, %s31
      %s20 = sphi 0, %s27
      %s21 = sphi 0, %s19
      %s22 = sphi 0, %s20
      %s23 = sphi 0, %s21
      %s24 = sphi 0, %s22
      %s36 = sphi 0, %s38
      %s39 = sphi 0, %s36
      %s40 = sphi 0, %s39
      %s56 = sphi 0, %s40
      %s60 = sphi 0, %s60
      %s62 = sphi 0, %s60
      %s63 = sphi 0, %s62
      %s77 = sphi 0, %s63
      %s81 = sphi 0, %s81
      %s83 = sphi 0, %s81
      %s84 = sphi 0, %s83
      %s98 = sphi 0, %s84
      %s106 = sphi 0, %s108
      %s109 = sphi 0, %s106
      %s110 = sphi 0, %s109
      %s126 = sphi 0, %s110
    $region4: #{tpu_custom_call.1} parent=1 // loop_header_branch
      %15 = sbr.rel (%p13) target = $region8
    $region5: #{tpu_custom_call.1} parent=1 // loop_body
      %s17 = ssub.s32 %s12, 1
      %s18 = ssub.s32 %s12, 2
      %s25 = sadd.s32 1, %s20
      %p26 = scmp.ge.s32.totalorder %s25, 2
      %s27 = scalar_select %p26, 0, %s25
      %s28 = sadd.s32 1, %s19
      %s29 = scalar_select %p26, %s28, %s19
      %p30 = scmp.ge.s32.totalorder %s29, 2
      %s31 = scalar_select %p30, 0, %s29
      %s32 = ssub.s32 %s19, %s31
      %s33 = ssub.s32 %s20, %s27
      %s34 = sor.u32 %s32, %s33
      %p35 = scmp.eq.s32.totalorder %s34, 0
      %s37 = sadd.s32 %s36, 1
      %s38 = scalar_select %p35, %s36, %s37
      %p41 = pneg %p35
      %p42 = scmp.eq.s32.totalorder %s12, 3
      %p43 = por %p41, %p42
      %p44 = scmp.ne.s32.totalorder %s36, %s39
      %p45 = scmp.eq.s32.totalorder %s12, 0
      %p46 = por %p44, %p45
      %p47 = scmp.ne.s32.totalorder %s36, %s39
      %p48 = scmp.eq.s32.totalorder %s17, 3
      %p49 = por %p47, %p48
      %p50 = scmp.ne.s32.totalorder %s39, %s40
      %p51 = scmp.eq.s32.totalorder %s17, 0
      %p52 = por %p50, %p51
      %p53 = scmp.ne.s32.totalorder %s39, %s40
      %p54 = scmp.eq.s32.totalorder %s18, 3
      %p55 = por %p53, %p54
      %p57 = scmp.ne.s32.totalorder %s40, %s56
      %p58 = scmp.eq.s32.totalorder %s18, 0
      %p59 = por %p57, %p58
      %s61 = sadd.s32 %s60, 1
      %p64 = scmp.eq.s32.totalorder %s12, 3
      %p65 = scmp.ne.s32.totalorder %s60, %s62
      %p66 = scmp.eq.s32.totalorder %s12, 0
      %p67 = por %p65, %p66
      %p68 = scmp.ne.s32.totalorder %s60, %s62
      %p69 = scmp.eq.s32.totalorder %s17, 3
      %p70 = por %p68, %p69
      %p71 = scmp.ne.s32.totalorder %s62, %s63
      %p72 = scmp.eq.s32.totalorder %s17, 0
      %p73 = por %p71, %p72
      %p74 = scmp.ne.s32.totalorder %s62, %s63
      %p75 = scmp.eq.s32.totalorder %s18, 3
      %p76 = por %p74, %p75
      %p78 = scmp.ne.s32.totalorder %s63, %s77
      %p79 = scmp.eq.s32.totalorder %s18, 0
      %p80 = por %p78, %p79
      %s82 = sadd.s32 %s81, 1
      %p85 = scmp.eq.s32.totalorder %s12, 3
      %p86 = scmp.ne.s32.totalorder %s81, %s83
      %p87 = scmp.eq.s32.totalorder %s12, 0
      %p88 = por %p86, %p87
      %p89 = scmp.ne.s32.totalorder %s81, %s83
      %p90 = scmp.eq.s32.totalorder %s17, 3
      %p91 = por %p89, %p90
      %p92 = scmp.ne.s32.totalorder %s83, %s84
      %p93 = scmp.eq.s32.totalorder %s17, 0
      %p94 = por %p92, %p93
      %p95 = scmp.ne.s32.totalorder %s83, %s84
      %p96 = scmp.eq.s32.totalorder %s18, 3
      %p97 = por %p95, %p96
      %p99 = scmp.ne.s32.totalorder %s84, %s98
      %p100 = scmp.eq.s32.totalorder %s18, 0
      %p101 = por %p99, %p100
      %s102 = ssub.s32 %s19, %s31
      %s103 = ssub.s32 %s20, %s27
      %s104 = sor.u32 %s102, %s103
      %p105 = scmp.eq.s32.totalorder %s104, 0
      %s107 = sadd.s32 %s106, 1
      %s108 = scalar_select %p105, %s106, %s107
      %p111 = pneg %p105
      %p112 = scmp.eq.s32.totalorder %s12, 3
      %p113 = por %p111, %p112
      %p114 = scmp.ne.s32.totalorder %s106, %s109
      %p115 = scmp.eq.s32.totalorder %s12, 0
      %p116 = por %p114, %p115
      %p117 = scmp.ne.s32.totalorder %s106, %s109
      %p118 = scmp.eq.s32.totalorder %s17, 3
      %p119 = por %p117, %p118
      %p120 = scmp.ne.s32.totalorder %s109, %s110
      %p121 = scmp.eq.s32.totalorder %s17, 0
      %p122 = por %p120, %p121
      %p123 = scmp.ne.s32.totalorder %s109, %s110
      %p124 = scmp.eq.s32.totalorder %s18, 3
      %p125 = por %p123, %p124
      %p127 = scmp.ne.s32.totalorder %s110, %s126
      %p128 = scmp.eq.s32.totalorder %s18, 0
      %p129 = por %p127, %p128
      %p130 = scmp.le.s32.totalorder 1, %s12
      %p131 = scmp.lt.s32.totalorder %s12, 5
      %p132 = pnand %p130, %p131
      %p133 = pneg %p132
      // Predicated region
      $region9: #{tpu_custom_call.1} parent=5 // pred_check
        _
      $region10: #{tpu_custom_call.1} parent=5 // pred_check_branch
        %135 = sbr.rel (%p132) target = $region12
      $region11: #{tpu_custom_call.1} parent=5 // pred_region
        %s136 = ssub.s32 %s12, 1
        // Predicated region
        $region13: #{tpu_custom_call.1} parent=11 // pred_check
          %p137 = pneg %p73
        $region14: #{tpu_custom_call.1} parent=11 // pred_check_branch
          %139 = sbr.rel (%p137) target = $region16
        $region15: #{tpu_custom_call.1} parent=11 // pred_region
          _
        $region16: #{tpu_custom_call.1} parent=11 // pred_fallthru
          _
        // Predicated region
        $region17: #{tpu_custom_call.1} parent=11 // pred_check
          %p140 = pneg %p94
        $region18: #{tpu_custom_call.1} parent=11 // pred_check_branch
          %142 = sbr.rel (%p140) target = $region20
        $region19: #{tpu_custom_call.1} parent=11 // pred_region
          _
        $region20: #{tpu_custom_call.1} parent=11 // pred_fallthru
          _
      $region12: #{tpu_custom_call.1} parent=5 // pred_fallthru
        _
      %p143 = scmp.lt.s32.totalorder %s12, 4
      // Predicated region
      $region21: #{tpu_custom_call.1} parent=5 // pred_check
        %p144 = pneg %p143
      $region22: #{tpu_custom_call.1} parent=5 // pred_check_branch
        %146 = sbr.rel (%p144) target = $region24
      $region23: #{tpu_custom_call.1} parent=5 // pred_region
        // Predicated region
        $region25: #{tpu_custom_call.1} parent=23 // pred_check
          %p147 = pneg %p46
        $region26: #{tpu_custom_call.1} parent=23 // pred_check_branch
          %149 = sbr.rel (%p147) target = $region28
        $region27: #{tpu_custom_call.1} parent=23 // pred_region
          %p150 = scmp.lt.s32.totalorder %s19, 1
          %s151 = scalar_select %p150, %s19, 1
          %p152 = scmp.lt.s32.totalorder %s20, 1
          %s153 = scalar_select %p152, %s20, 1
          %s154 = smul.addr %s153, 30
          %s155 = smul.addr %s151, 60
          %s156 = sadd.s32 %s154, %s155
          %s157 = smul.addr %s156, 8
          %s158 = scalar_lea.vmem %s0, %s157
        $region28: #{tpu_custom_call.1} parent=23 // pred_fallthru
          _
      $region24: #{tpu_custom_call.1} parent=5 // pred_fallthru
        _
      %p159 = scmp.le.s32.totalorder 1, %s12
      %p160 = scmp.lt.s32.totalorder %s12, 5
      %p161 = pnand %p159, %p160
      %p162 = pneg %p161
      // Predicated region
      $region29: #{tpu_custom_call.1} parent=5 // pred_check
        _
      $region30: #{tpu_custom_call.1} parent=5 // pred_check_branch
        %164 = sbr.rel (%p161) target = $region32
      $region31: #{tpu_custom_call.1} parent=5 // pred_region
        %s165 = ssub.s32 %s12, 1
        %p166 = scmp.lt.s32.totalorder %s21, 1
        %s167 = scalar_select %p166, %s21, 1
        %p168 = scmp.lt.s32.totalorder %s22, 1
        %s169 = scalar_select %p168, %s22, 1
        %s170 = smul.addr %s169, 30
        %s171 = smul.addr %s167, 60
        %s172 = sadd.s32 %s170, %s171
        %s173 = smul.addr %s172, 8
        %s174 = scalar_lea.vmem %s0, %s173
        %p175 = pneg %p52
        %p176 = pneg %p49
        %p177 = pneg %p73
        %p178 = pneg %p70
        %p179 = pneg %p94
        %p180 = pneg %p91
        %p181 = pneg %p122
        %p182 = pneg %p119
        %s183 = sand.u32 %s109, 1
        %s184 = scalar_lea.sflag [#allocation3], %s183
        %s185 = sand.u32 %s109, 1
        %s186 = smul.addr %s185, 256
        %s187 = scalar_lea.vmem [#allocation2], %s186
        %p188 = scmp.lt.s32.totalorder %s21, 1
        %s189 = scalar_select %p188, %s21, 1
        %p190 = scmp.lt.s32.totalorder %s22, 1
        %s191 = scalar_select %p190, %s22, 1
        %s192 = smul.addr %s191, 30
        %s193 = smul.addr %s189, 60
        %s194 = sadd.s32 %s192, %s193
        %s195 = smul.addr %s194, 8
        %s196 = scalar_lea.vmem %s0, %s195
        %s197 = smul.u32 8, %s22
        %v198 = vld [vmem:[%s196] sm:$0xff]
        %v199 = vld [vmem:[%s196 + $0x8] sm:$0xff]
        %v200 = vld [vmem:[%s196 + $0x10] sm:$0x3]
        %v201 = vld [vmem:[%s196 + $0x18] sm:$0xff]
        %v202 = vld [vmem:[%s196 + $0x20] sm:$0xff]
        %v203 = vld [vmem:[%s196 + $0x28] sm:$0x3]
        %v204 = vld [vmem:[%s196 + $0x30] sm:$0xff]
        %v205 = vld [vmem:[%s196 + $0x38] sm:$0xff]
        %v206 = vld [vmem:[%s196 + $0x40] sm:$0x3]
        %v207 = vld [vmem:[%s196 + $0x48] sm:$0xff]
        %v208 = vld [vmem:[%s196 + $0x50] sm:$0xff]
        %v209 = vld [vmem:[%s196 + $0x58] sm:$0x3]
        %v210 = vld [vmem:[%s196 + $0x60] sm:$0xff]
        %v211 = vld [vmem:[%s196 + $0x68] sm:$0xff]
        %v212 = vld [vmem:[%s196 + $0x70] sm:$0x3]
        %v213 = vld [vmem:[%s196 + $0x78] sm:$0xff]
        %v214 = vld [vmem:[%s196 + $0x80] sm:$0xff]
        %v215 = vld [vmem:[%s196 + $0x88] sm:$0x3]
        %v216 = vld [vmem:[%s196 + $0x90] sm:$0xff]
        %v217 = vld [vmem:[%s196 + $0x98] sm:$0xff]
        %v218 = vld [vmem:[%s196 + $0xa0] sm:$0x3]
        %v219 = vld [vmem:[%s196 + $0xa8] sm:$0xff]
        %v220 = vld [vmem:[%s196 + $0xb0] sm:$0xff]
        %v221 = vld [vmem:[%s196 + $0xb8] sm:$0x3]
        %v222 = vld [vmem:[%s196 + $0xc0] sm:$0xff]
        %v223 = vld [vmem:[%s196 + $0xc8] sm:$0xff]
        %v224 = vld [vmem:[%s196 + $0xd0] sm:$0x3]
        %v225 = vld [vmem:[%s196 + $0xd8] sm:$0xff]
        %v226 = vld [vmem:[%s196 + $0xe0] sm:$0xff]
        %v227 = vld [vmem:[%s196 + $0xe8] sm:$0x3]
        %vm258 = vcmask 1046528
        %v259 = vrot.slane %v198, 1
        %v260 = vrot.slane %v199, 1
        %v261 = vsel %vm258, %v259, %v260
        %v262 = vrot.slane %v200, 1
        %v263 = vsel %vm258, %v260, %v262
        %v264 = vrot.slane %v201, 1
        %v265 = vrot.slane %v202, 1
        %v266 = vsel %vm258, %v264, %v265
        %v267 = vrot.slane %v203, 1
        %v268 = vsel %vm258, %v265, %v267
        %v269 = vrot.slane %v204, 1
        %v270 = vrot.slane %v205, 1
        %v271 = vsel %vm258, %v269, %v270
        %v272 = vrot.slane %v206, 1
        %v273 = vsel %vm258, %v270, %v272
        %v274 = vrot.slane %v207, 1
        %v275 = vrot.slane %v208, 1
        %v276 = vsel %vm258, %v274, %v275
        %v277 = vrot.slane %v209, 1
        %v278 = vsel %vm258, %v275, %v277
        %v279 = vrot.slane %v210, 1
        %v280 = vrot.slane %v211, 1
        %v281 = vsel %vm258, %v279, %v280
        %v282 = vrot.slane %v212, 1
        %v283 = vsel %vm258, %v280, %v282
        %v284 = vrot.slane %v213, 1
        %v285 = vrot.slane %v214, 1
        %v286 = vsel %vm258, %v284, %v285
        %v287 = vrot.slane %v215, 1
        %v288 = vsel %vm258, %v285, %v287
        %v289 = vrot.slane %v216, 1
        %v290 = vrot.slane %v217, 1
        %v291 = vsel %vm258, %v289, %v290
        %v292 = vrot.slane %v218, 1
        %v293 = vsel %vm258, %v290, %v292
        %v294 = vrot.slane %v219, 1
        %v295 = vrot.slane %v220, 1
        %v296 = vsel %vm258, %v294, %v295
        %v297 = vrot.slane %v221, 1
        %v298 = vsel %vm258, %v295, %v297
        %v299 = vrot.slane %v222, 1
        %v300 = vrot.slane %v223, 1
        %v301 = vsel %vm258, %v299, %v300
        %v302 = vrot.slane %v224, 1
        %v303 = vsel %vm258, %v300, %v302
        %v304 = vrot.slane %v225, 1
        %v305 = vrot.slane %v226, 1
        %v306 = vsel %vm258, %v304, %v305
        %v307 = vrot.slane %v227, 1
        %v308 = vsel %vm258, %v305, %v307
        %309 = vrot.lane.b32.xlu0 %v261, 4
        %v310 = vpop.permute.xlu0 %309
        %311 = vrot.lane.b32.xlu0 %v263, 4
        %v312 = vpop.permute.xlu0 %311
        %313 = vrot.lane.b32.xlu0 %v266, 4
        %v314 = vpop.permute.xlu0 %313
        %315 = vrot.lane.b32.xlu0 %v268, 4
        %v316 = vpop.permute.xlu0 %315
        %317 = vrot.lane.b32.xlu0 %v271, 4
        %v318 = vpop.permute.xlu0 %317
        %319 = vrot.lane.b32.xlu0 %v273, 4
        %v320 = vpop.permute.xlu0 %319
        %321 = vrot.lane.b32.xlu0 %v276, 4
        %v322 = vpop.permute.xlu0 %321
        %323 = vrot.lane.b32.xlu0 %v278, 4
        %v324 = vpop.permute.xlu0 %323
        %325 = vrot.lane.b32.xlu0 %v281, 4
        %v326 = vpop.permute.xlu0 %325
        %327 = vrot.lane.b32.xlu0 %v283, 4
        %v328 = vpop.permute.xlu0 %327
        %329 = vrot.lane.b32.xlu0 %v286, 4
        %v330 = vpop.permute.xlu0 %329
        %331 = vrot.lane.b32.xlu0 %v288, 4
        %v332 = vpop.permute.xlu0 %331
        %333 = vrot.lane.b32.xlu0 %v291, 4
        %v334 = vpop.permute.xlu0 %333
        %335 = vrot.lane.b32.xlu0 %v293, 4
        %v336 = vpop.permute.xlu0 %335
        %337 = vrot.lane.b32.xlu0 %v296, 4
        %v338 = vpop.permute.xlu0 %337
        %339 = vrot.lane.b32.xlu0 %v298, 4
        %v340 = vpop.permute.xlu0 %339
        %341 = vrot.lane.b32.xlu0 %v301, 4
        %v342 = vpop.permute.xlu0 %341
        %343 = vrot.lane.b32.xlu0 %v303, 4
        %v344 = vpop.permute.xlu0 %343
        %345 = vrot.lane.b32.xlu0 %v306, 4
        %v346 = vpop.permute.xlu0 %345
        %347 = vrot.lane.b32.xlu0 %v308, 4
        %v348 = vpop.permute.xlu0 %347
        %vm369 = vcmask 1045504
        %v370 = vrot.slane %v198, 2
        %v371 = vrot.slane %v199, 2
        %v372 = vsel %vm369, %v370, %v371
        %v373 = vrot.slane %v200, 2
        %v374 = vsel %vm369, %v371, %v373
        %v375 = vrot.slane %v201, 2
        %v376 = vrot.slane %v202, 2
        %v377 = vsel %vm369, %v375, %v376
        %v378 = vrot.slane %v203, 2
        %v379 = vsel %vm369, %v376, %v378
        %v380 = vrot.slane %v204, 2
        %v381 = vrot.slane %v205, 2
        %v382 = vsel %vm369, %v380, %v381
        %v383 = vrot.slane %v206, 2
        %v384 = vsel %vm369, %v381, %v383
        %v385 = vrot.slane %v207, 2
        %v386 = vrot.slane %v208, 2
        %v387 = vsel %vm369, %v385, %v386
        %v388 = vrot.slane %v209, 2
        %v389 = vsel %vm369, %v386, %v388
        %v390 = vrot.slane %v210, 2
        %v391 = vrot.slane %v211, 2
        %v392 = vsel %vm369, %v390, %v391
        %v393 = vrot.slane %v212, 2
        %v394 = vsel %vm369, %v391, %v393
        %v395 = vrot.slane %v213, 2
        %v396 = vrot.slane %v214, 2
        %v397 = vsel %vm369, %v395, %v396
        %v398 = vrot.slane %v215, 2
        %v399 = vsel %vm369, %v396, %v398
        %v400 = vrot.slane %v216, 2
        %v401 = vrot.slane %v217, 2
        %v402 = vsel %vm369, %v400, %v401
        %v403 = vrot.slane %v218, 2
        %v404 = vsel %vm369, %v401, %v403
        %v405 = vrot.slane %v219, 2
        %v406 = vrot.slane %v220, 2
        %v407 = vsel %vm369, %v405, %v406
        %v408 = vrot.slane %v221, 2
        %v409 = vsel %vm369, %v406, %v408
        %v410 = vrot.slane %v222, 2
        %v411 = vrot.slane %v223, 2
        %v412 = vsel %vm369, %v410, %v411
        %v413 = vrot.slane %v224, 2
        %v414 = vsel %vm369, %v411, %v413
        %v415 = vrot.slane %v225, 2
        %v416 = vrot.slane %v226, 2
        %v417 = vsel %vm369, %v415, %v416
        %v418 = vrot.slane %v227, 2
        %v419 = vsel %vm369, %v416, %v418
        %420 = vrot.lane.b32.xlu0 %v372, 8
        %v421 = vpop.permute.xlu0 %420
        %422 = vrot.lane.b32.xlu0 %v374, 8
        %v423 = vpop.permute.xlu0 %422
        %424 = vrot.lane.b32.xlu0 %v377, 8
        %v425 = vpop.permute.xlu0 %424
        %426 = vrot.lane.b32.xlu0 %v379, 8
        %v427 = vpop.permute.xlu0 %426
        %428 = vrot.lane.b32.xlu0 %v382, 8
        %v429 = vpop.permute.xlu0 %428
        %430 = vrot.lane.b32.xlu0 %v384, 8
        %v431 = vpop.permute.xlu0 %430
        %432 = vrot.lane.b32.xlu0 %v387, 8
        %v433 = vpop.permute.xlu0 %432
        %434 = vrot.lane.b32.xlu0 %v389, 8
        %v435 = vpop.permute.xlu0 %434
        %436 = vrot.lane.b32.xlu0 %v392, 8
        %v437 = vpop.permute.xlu0 %436
        %438 = vrot.lane.b32.xlu0 %v394, 8
        %v439 = vpop.permute.xlu0 %438
        %440 = vrot.lane.b32.xlu0 %v397, 8
        %v441 = vpop.permute.xlu0 %440
        %442 = vrot.lane.b32.xlu0 %v399, 8
        %v443 = vpop.permute.xlu0 %442
        %444 = vrot.lane.b32.xlu0 %v402, 8
        %v445 = vpop.permute.xlu0 %444
        %446 = vrot.lane.b32.xlu0 %v404, 8
        %v447 = vpop.permute.xlu0 %446
        %448 = vrot.lane.b32.xlu0 %v407, 8
        %v449 = vpop.permute.xlu0 %448
        %450 = vrot.lane.b32.xlu0 %v409, 8
        %v451 = vpop.permute.xlu0 %450
        %452 = vrot.lane.b32.xlu0 %v412, 8
        %v453 = vpop.permute.xlu0 %452
        %454 = vrot.lane.b32.xlu0 %v414, 8
        %v455 = vpop.permute.xlu0 %454
        %456 = vrot.lane.b32.xlu0 %v417, 8
        %v457 = vpop.permute.xlu0 %456
        %458 = vrot.lane.b32.xlu0 %v419, 8
        %v459 = vpop.permute.xlu0 %458
        %vm480 = vcmask 31744
        %v481 = vsel %vm480, %v198, %v310
        %v482 = vsel %vm480, %v199, %v312
        %v483 = vsel %vm480, %v201, %v314
        %v484 = vsel %vm480, %v202, %v316
        %v485 = vsel %vm480, %v204, %v318
        %v486 = vsel %vm480, %v205, %v320
        %v487 = vsel %vm480, %v207, %v322
        %v488 = vsel %vm480, %v208, %v324
        %v489 = vsel %vm480, %v210, %v326
        %v490 = vsel %vm480, %v211, %v328
        %v491 = vsel %vm480, %v213, %v330
        %v492 = vsel %vm480, %v214, %v332
        %v493 = vsel %vm480, %v216, %v334
        %v494 = vsel %vm480, %v217, %v336
        %v495 = vsel %vm480, %v219, %v338
        %v496 = vsel %vm480, %v220, %v340
        %v497 = vsel %vm480, %v222, %v342
        %v498 = vsel %vm480, %v223, %v344
        %v499 = vsel %vm480, %v225, %v346
        %v500 = vsel %vm480, %v226, %v348
        %vm501 = vcmask 64512
        %v502 = vsel %vm501, %v481, %v421
        %v503 = vsel %vm501, %v482, %v423
        %v504 = vsel %vm501, %v483, %v425
        %v505 = vsel %vm501, %v484, %v427
        %v506 = vsel %vm501, %v485, %v429
        %v507 = vsel %vm501, %v486, %v431
        %v508 = vsel %vm501, %v487, %v433
        %v509 = vsel %vm501, %v488, %v435
        %v510 = vsel %vm501, %v489, %v437
        %v511 = vsel %vm501, %v490, %v439
        %v512 = vsel %vm501, %v491, %v441
        %v513 = vsel %vm501, %v492, %v443
        %v514 = vsel %vm501, %v493, %v445
        %v515 = vsel %vm501, %v494, %v447
        %v516 = vsel %vm501, %v495, %v449
        %v517 = vsel %vm501, %v496, %v451
        %v518 = vsel %vm501, %v497, %v453
        %v519 = vsel %vm501, %v498, %v455
        %v520 = vsel %vm501, %v499, %v457
        %v521 = vsel %vm501, %v500, %v459
        %v522 = vld [vmem:[%s1] sm:$0xff]
        %v523 = vld [vmem:[%s1 + $0x8] sm:$0xf]
        %vm524 = vcmask 97280
        %v526 = vsel %vm524, %v502, 0
        %v529 = vsel %vm524, %v503, 0
        %v532 = vsel %vm524, %v504, 0
        %v535 = vsel %vm524, %v505, 0
        %v538 = vsel %vm524, %v506, 0
        %v541 = vsel %vm524, %v507, 0
        %v544 = vsel %vm524, %v508, 0
        %v547 = vsel %vm524, %v509, 0
        %v550 = vsel %vm524, %v510, 0
        %v553 = vsel %vm524, %v511, 0
        %v556 = vsel %vm524, %v512, 0
        %v559 = vsel %vm524, %v513, 0
        %v562 = vsel %vm524, %v514, 0
        %v565 = vsel %vm524, %v515, 0
        %v568 = vsel %vm524, %v516, 0
        %v571 = vsel %vm524, %v517, 0
        %v574 = vsel %vm524, %v518, 0
        %v577 = vsel %vm524, %v519, 0
        %v580 = vsel %vm524, %v520, 0
        %v583 = vsel %vm524, %v521, 0
        %vm585 = vcmask 1043456
        %v587 = vsel %vm585, %v523, 0
        %589 = vmatprep.subr.mxu0 0.0
        %590 = vmatpush1.msra.mxu0 0.0
        %591 = vmatprep.subr.mxu0 0.0
        %592 = vmatpush1.msra.mxu0 0.0
        %593 = vmatprep.subr.mxu0 0.0
        %594 = vmatpush1.msra.mxu0 0.0
        %595 = vmatprep.subr.mxu0 0.0
        %596 = vmatpush1.msra.mxu0 0.0
        %597 = vmatprep.subr.mxu0 0.0
        %598 = vmatpush1.msra.mxu0 0.0
        %599 = vmatprep.subr.mxu0 0.0
        %600 = vmatpush1.msra.mxu0 0.0
        %601 = vmatprep.subr.mxu0 0.0
        %602 = vmatpush1.msra.mxu0 0.0
        %603 = vmatprep.subr.mxu0 0.0
        %604 = vmatpush1.msra.mxu0 0.0
        %605 = vmatprep.subr.mxu0 0.0
        %606 = vmatpush1.msra.mxu0 0.0
        %607 = vmatprep.subr.mxu0 0.0
        %608 = vmatpush1.msra.mxu0 0.0
        %609 = vmatprep.subr.mxu0 0.0
        %610 = vmatpush1.msra.mxu0 0.0
        %611 = vmatprep.subr.mxu0 0.0
        %612 = vmatpush1.msra.mxu0 0.0
        %613 = vmatprep.subr.mxu0 0.0
        %614 = vmatpush1.msra.mxu0 0.0
        %615 = vmatprep.subr.mxu0 0.0
        %616 = vmatpush1.msra.mxu0 0.0
        %617 = vmatprep.subr.mxu0 0.0
        %618 = vmatpush1.msra.mxu0 %v587
        %619 = vmatprep.subr.mxu0 0.0
        %620 = vmatpush1.msra.mxu0 %v522
        %621 = vmatprep.subr.mxu0 0.0
        %622 = vmatpush2.msra.mxu0 0.0
        %623 = vmatprep.subr.mxu0 0.0
        %624 = vmatpush2.msra.mxu0 0.0
        %625 = vmatprep.subr.mxu0 0.0
        %626 = vmatpush2.msra.mxu0 0.0
        %627 = vmatprep.subr.mxu0 0.0
        %628 = vmatpush2.msra.mxu0 0.0
        %629 = vmatprep.subr.mxu0 0.0
        %630 = vmatpush2.msra.mxu0 0.0
        %631 = vmatprep.subr.mxu0 0.0
        %632 = vmatpush2.msra.mxu0 0.0
        %633 = vmatprep.subr.mxu0 0.0
        %634 = vmatpush2.msra.mxu0 0.0
        %635 = vmatprep.subr.mxu0 0.0
        %636 = vmatpush2.msra.mxu0 0.0
        %637 = vmatprep.subr.mxu0 0.0
        %638 = vmatpush2.msra.mxu0 0.0
        %639 = vmatprep.subr.mxu0 0.0
        %640 = vmatpush2.msra.mxu0 0.0
        %641 = vmatprep.subr.mxu0 0.0
        %642 = vmatpush2.msra.mxu0 0.0
        %643 = vmatprep.subr.mxu0 0.0
        %644 = vmatpush2.msra.mxu0 0.0
        %645 = vmatprep.subr.mxu0 0.0
        %646 = vmatpush2.msra.mxu0 0.0
        %647 = vmatprep.subr.mxu0 0.0
        %648 = vmatpush2.msra.mxu0 0.0
        %649 = vmatprep.subr.mxu0 0.0
        %650 = vmatpush2.msra.mxu0 0.0
        %651 = vmatprep.subr.mxu0 0.0
        %652 = vmatpush2.msra.mxu0 0.0
        %653 = vmatprep.mubr.f32.mxu0 0.0
        %654 = vmatmul.mubr.f32.gmra.mxu0 %v526
        %v655 = vpop.f32.mrf.mxu0
        %v656 = vadd.f32 0.0, %v655
        %v657 = vpop.f32.mrf.mxu0
        %658 = vmatprep.mubr.f32.mxu0 0.0
        %659 = vmatmul.mubr.f32.gmra.mxu0 %v529
        %v660 = vpop.f32.mrf.mxu0
        %v661 = vadd.f32 0.0, %v660
        %v662 = vpop.f32.mrf.mxu0
        %663 = vmatprep.mubr.f32.mxu0 0.0
        %664 = vmatmul.mubr.f32.gmra.mxu0 %v532
        %v665 = vpop.f32.mrf.mxu0
        %v666 = vadd.f32 0.0, %v665
        %v667 = vpop.f32.mrf.mxu0
        %668 = vmatprep.mubr.f32.mxu0 0.0
        %669 = vmatmul.mubr.f32.gmra.mxu0 %v535
        %v670 = vpop.f32.mrf.mxu0
        %v671 = vadd.f32 0.0, %v670
        %v672 = vpop.f32.mrf.mxu0
        %673 = vmatprep.mubr.f32.mxu0 0.0
        %674 = vmatmul.mubr.f32.gmra.mxu0 %v538
        %v675 = vpop.f32.mrf.mxu0
        %v676 = vadd.f32 0.0, %v675
        %v677 = vpop.f32.mrf.mxu0
        %678 = vmatprep.mubr.f32.mxu0 0.0
        %679 = vmatmul.mubr.f32.gmra.mxu0 %v541
        %v680 = vpop.f32.mrf.mxu0
        %v681 = vadd.f32 0.0, %v680
        %v682 = vpop.f32.mrf.mxu0
        %683 = vmatprep.mubr.f32.mxu0 0.0
        %684 = vmatmul.mubr.f32.gmra.mxu0 %v544
        %v685 = vpop.f32.mrf.mxu0
        %v686 = vadd.f32 0.0, %v685
        %v687 = vpop.f32.mrf.mxu0
        %688 = vmatprep.mubr.f32.mxu0 0.0
        %689 = vmatmul.mubr.f32.gmra.mxu0 %v547
        %v690 = vpop.f32.mrf.mxu0
        %v691 = vadd.f32 0.0, %v690
        %v692 = vpop.f32.mrf.mxu0
        %693 = vmatprep.mubr.f32.mxu0 0.0
        %694 = vmatmul.mubr.f32.gmra.mxu0 %v550
        %v695 = vpop.f32.mrf.mxu0
        %v696 = vadd.f32 0.0, %v695
        %v697 = vpop.f32.mrf.mxu0
        %698 = vmatprep.mubr.f32.mxu0 0.0
        %699 = vmatmul.mubr.f32.gmra.mxu0 %v553
        %v700 = vpop.f32.mrf.mxu0
        %v701 = vadd.f32 0.0, %v700
        %v702 = vpop.f32.mrf.mxu0
        %703 = vmatprep.mubr.f32.mxu0 0.0
        %704 = vmatmul.mubr.f32.gmra.mxu0 %v556
        %v705 = vpop.f32.mrf.mxu0
        %v706 = vadd.f32 0.0, %v705
        %v707 = vpop.f32.mrf.mxu0
        %708 = vmatprep.mubr.f32.mxu0 0.0
        %709 = vmatmul.mubr.f32.gmra.mxu0 %v559
        %v710 = vpop.f32.mrf.mxu0
        %v711 = vadd.f32 0.0, %v710
        %v712 = vpop.f32.mrf.mxu0
        %713 = vmatprep.mubr.f32.mxu0 0.0
        %714 = vmatmul.mubr.f32.gmra.mxu0 %v562
        %v715 = vpop.f32.mrf.mxu0
        %v716 = vadd.f32 0.0, %v715
        %v717 = vpop.f32.mrf.mxu0
        %718 = vmatprep.mubr.f32.mxu0 0.0
        %719 = vmatmul.mubr.f32.gmra.mxu0 %v565
        %v720 = vpop.f32.mrf.mxu0
        %v721 = vadd.f32 0.0, %v720
        %v722 = vpop.f32.mrf.mxu0
        %723 = vmatprep.mubr.f32.mxu0 0.0
        %724 = vmatmul.mubr.f32.gmra.mxu0 %v568
        %v725 = vpop.f32.mrf.mxu0
        %v726 = vadd.f32 0.0, %v725
        %v727 = vpop.f32.mrf.mxu0
        %728 = vmatprep.mubr.f32.mxu0 0.0
        %729 = vmatmul.mubr.f32.gmra.mxu0 %v571
        %v730 = vpop.f32.mrf.mxu0
        %v731 = vadd.f32 0.0, %v730
        %v732 = vpop.f32.mrf.mxu0
        %733 = vmatprep.mubr.f32.mxu0 0.0
        %734 = vmatmul.mubr.f32.gmra.mxu0 %v574
        %v735 = vpop.f32.mrf.mxu0
        %v736 = vadd.f32 0.0, %v735
        %v737 = vpop.f32.mrf.mxu0
        %738 = vmatprep.mubr.f32.mxu0 0.0
        %739 = vmatmul.mubr.f32.gmra.mxu0 %v577
        %v740 = vpop.f32.mrf.mxu0
        %v741 = vadd.f32 0.0, %v740
        %v742 = vpop.f32.mrf.mxu0
        %743 = vmatprep.mubr.f32.mxu0 0.0
        %744 = vmatmul.mubr.f32.gmra.mxu0 %v580
        %v745 = vpop.f32.mrf.mxu0
        %v746 = vadd.f32 0.0, %v745
        %v747 = vpop.f32.mrf.mxu0
        %748 = vmatprep.mubr.f32.mxu0 0.0
        %749 = vmatmul.mubr.f32.gmra.mxu0 %v583
        %v750 = vpop.f32.mrf.mxu0
        %v751 = vadd.f32 0.0, %v750
        %v752 = vpop.f32.mrf.mxu0
        %753 = vdwg.mxu0
        %v754 = vld [vmem:[%s2] sm:$0x1]
        %771 = vrot.lane.b32.xlu0 %v656, 96
        %v772 = vpop.permute.xlu0 %771
        %773 = vrot.lane.b32.xlu0 %v661, 96
        %v774 = vpop.permute.xlu0 %773
        %775 = vrot.lane.b32.xlu0 %v666, 96
        %v776 = vpop.permute.xlu0 %775
        %777 = vrot.lane.b32.xlu0 %v671, 96
        %v778 = vpop.permute.xlu0 %777
        %779 = vrot.lane.b32.xlu0 %v676, 96
        %v780 = vpop.permute.xlu0 %779
        %781 = vrot.lane.b32.xlu0 %v681, 96
        %v782 = vpop.permute.xlu0 %781
        %783 = vrot.lane.b32.xlu0 %v686, 96
        %v784 = vpop.permute.xlu0 %783
        %785 = vrot.lane.b32.xlu0 %v691, 96
        %v786 = vpop.permute.xlu0 %785
        %787 = vrot.lane.b32.xlu0 %v696, 96
        %v788 = vpop.permute.xlu0 %787
        %789 = vrot.lane.b32.xlu0 %v701, 96
        %v790 = vpop.permute.xlu0 %789
        %791 = vrot.lane.b32.xlu0 %v706, 96
        %v792 = vpop.permute.xlu0 %791
        %793 = vrot.lane.b32.xlu0 %v711, 96
        %v794 = vpop.permute.xlu0 %793
        %795 = vrot.lane.b32.xlu0 %v716, 96
        %v796 = vpop.permute.xlu0 %795
        %797 = vrot.lane.b32.xlu0 %v721, 96
        %v798 = vpop.permute.xlu0 %797
        %799 = vrot.lane.b32.xlu0 %v726, 96
        %v800 = vpop.permute.xlu0 %799
        %801 = vrot.lane.b32.xlu0 %v731, 96
        %v802 = vpop.permute.xlu0 %801
        %v819 = vadd.f32 %v666, %v772
        %v820 = vadd.f32 %v671, %v774
        %v821 = vadd.f32 %v676, %v776
        %v822 = vadd.f32 %v681, %v778
        %v823 = vadd.f32 %v686, %v780
        %v824 = vadd.f32 %v691, %v782
        %v825 = vadd.f32 %v696, %v784
        %v826 = vadd.f32 %v701, %v786
        %v827 = vadd.f32 %v706, %v788
        %v828 = vadd.f32 %v711, %v790
        %v829 = vadd.f32 %v716, %v792
        %v830 = vadd.f32 %v721, %v794
        %v831 = vadd.f32 %v726, %v796
        %v832 = vadd.f32 %v731, %v798
        %v833 = vadd.f32 %v736, %v800
        %v834 = vadd.f32 %v741, %v802
        %v836 = vlaneseq
        %v837 = vshrl.u32 %v836, 7
        %v838 = vsub.s32 0, %v837
        %v839 = vrot.slane %v754, %v838
        %841 = vrot.lane.b32.xlu0 %v839, 16
        %v842 = vpop.permute.xlu0 %841
        %v844 = vadd.f32 %v819, %v842
        %v845 = vadd.f32 %v820, %v842
        %v846 = vadd.f32 %v821, %v842
        %v847 = vadd.f32 %v822, %v842
        %v848 = vadd.f32 %v823, %v842
        %v849 = vadd.f32 %v824, %v842
        %v850 = vadd.f32 %v825, %v842
        %v851 = vadd.f32 %v826, %v842
        %v852 = vadd.f32 %v827, %v842
        %v853 = vadd.f32 %v828, %v842
        %v854 = vadd.f32 %v829, %v842
        %v855 = vadd.f32 %v830, %v842
        %v856 = vadd.f32 %v831, %v842
        %v857 = vadd.f32 %v832, %v842
        %v858 = vadd.f32 %v833, %v842
        %v859 = vadd.f32 %v834, %v842
        %v860 = vmax.f32 %v844, 0.0
        %v861 = vmax.f32 %v845, 0.0
        %v862 = vmax.f32 %v846, 0.0
        %v863 = vmax.f32 %v847, 0.0
        %v864 = vmax.f32 %v848, 0.0
        %v865 = vmax.f32 %v849, 0.0
        %v866 = vmax.f32 %v850, 0.0
        %v867 = vmax.f32 %v851, 0.0
        %v868 = vmax.f32 %v852, 0.0
        %v869 = vmax.f32 %v853, 0.0
        %v870 = vmax.f32 %v854, 0.0
        %v871 = vmax.f32 %v855, 0.0
        %v872 = vmax.f32 %v856, 0.0
        %v873 = vmax.f32 %v857, 0.0
        %v874 = vmax.f32 %v858, 0.0
        %v875 = vmax.f32 %v859, 0.0
        %878 = vrot.lane.b32.xlu0 %v736, 96
        %v879 = vpop.permute.xlu0 %878
        %880 = vrot.lane.b32.xlu0 %v741, 96
        %v881 = vpop.permute.xlu0 %880
        %v884 = vadd.f32 %v746, %v879
        %v885 = vadd.f32 %v751, %v881
        %v886 = vadd.f32 %v821, %v839
        %v887 = vadd.f32 %v822, %v839
        %v888 = vadd.f32 %v823, %v839
        %v889 = vadd.f32 %v824, %v839
        %v890 = vadd.f32 %v825, %v839
        %v891 = vadd.f32 %v826, %v839
        %v892 = vadd.f32 %v827, %v839
        %v893 = vadd.f32 %v828, %v839
        %v894 = vadd.f32 %v829, %v839
        %v895 = vadd.f32 %v830, %v839
        %v896 = vadd.f32 %v831, %v839
        %v897 = vadd.f32 %v832, %v839
        %v898 = vadd.f32 %v833, %v839
        %v899 = vadd.f32 %v834, %v839
        %v900 = vadd.f32 %v884, %v839
        %v901 = vadd.f32 %v885, %v839
        %v902 = vmax.f32 %v886, 0.0
        %v903 = vmax.f32 %v887, 0.0
        %v904 = vmax.f32 %v888, 0.0
        %v905 = vmax.f32 %v889, 0.0
        %v906 = vmax.f32 %v890, 0.0
        %v907 = vmax.f32 %v891, 0.0
        %v908 = vmax.f32 %v892, 0.0
        %v909 = vmax.f32 %v893, 0.0
        %v910 = vmax.f32 %v894, 0.0
        %v911 = vmax.f32 %v895, 0.0
        %v912 = vmax.f32 %v896, 0.0
        %v913 = vmax.f32 %v897, 0.0
        %v914 = vmax.f32 %v898, 0.0
        %v915 = vmax.f32 %v899, 0.0
        %v916 = vmax.f32 %v900, 0.0
        %v917 = vmax.f32 %v901, 0.0
        %934 = vrot.lane.b32.xlu0 %v860, 112
        %v935 = vpop.permute.xlu0 %934
        %936 = vrot.lane.b32.xlu0 %v861, 112
        %v937 = vpop.permute.xlu0 %936
        %938 = vrot.lane.b32.xlu0 %v862, 112
        %v939 = vpop.permute.xlu0 %938
        %940 = vrot.lane.b32.xlu0 %v863, 112
        %v941 = vpop.permute.xlu0 %940
        %942 = vrot.lane.b32.xlu0 %v864, 112
        %v943 = vpop.permute.xlu0 %942
        %944 = vrot.lane.b32.xlu0 %v865, 112
        %v945 = vpop.permute.xlu0 %944
        %946 = vrot.lane.b32.xlu0 %v866, 112
        %v947 = vpop.permute.xlu0 %946
        %948 = vrot.lane.b32.xlu0 %v867, 112
        %v949 = vpop.permute.xlu0 %948
        %950 = vrot.lane.b32.xlu0 %v868, 112
        %v951 = vpop.permute.xlu0 %950
        %952 = vrot.lane.b32.xlu0 %v869, 112
        %v953 = vpop.permute.xlu0 %952
        %954 = vrot.lane.b32.xlu0 %v870, 112
        %v955 = vpop.permute.xlu0 %954
        %956 = vrot.lane.b32.xlu0 %v871, 112
        %v957 = vpop.permute.xlu0 %956
        %958 = vrot.lane.b32.xlu0 %v872, 112
        %v959 = vpop.permute.xlu0 %958
        %960 = vrot.lane.b32.xlu0 %v873, 112
        %v961 = vpop.permute.xlu0 %960
        %962 = vrot.lane.b32.xlu0 %v874, 112
        %v963 = vpop.permute.xlu0 %962
        %964 = vrot.lane.b32.xlu0 %v875, 112
        %v965 = vpop.permute.xlu0 %964
        %vm982 = vcmask 130048
        %983 = vst.msk [vmem:[%s187] sm:$0xff] %vm982, %v935
        %984 = vst.msk [vmem:[%s187 + $0x8] sm:$0xff] %vm982, %v937
        %985 = vst.msk [vmem:[%s187 + $0x20] sm:$0xff] %vm982, %v939
        %986 = vst.msk [vmem:[%s187 + $0x28] sm:$0xff] %vm982, %v941
        %987 = vst.msk [vmem:[%s187 + $0x40] sm:$0xff] %vm982, %v943
        %988 = vst.msk [vmem:[%s187 + $0x48] sm:$0xff] %vm982, %v945
        %989 = vst.msk [vmem:[%s187 + $0x60] sm:$0xff] %vm982, %v947
        %990 = vst.msk [vmem:[%s187 + $0x68] sm:$0xff] %vm982, %v949
        %991 = vst.msk [vmem:[%s187 + $0x80] sm:$0xff] %vm982, %v951
        %992 = vst.msk [vmem:[%s187 + $0x88] sm:$0xff] %vm982, %v953
        %993 = vst.msk [vmem:[%s187 + $0xa0] sm:$0xff] %vm982, %v955
        %994 = vst.msk [vmem:[%s187 + $0xa8] sm:$0xff] %vm982, %v957
        %995 = vst.msk [vmem:[%s187 + $0xc0] sm:$0xff] %vm982, %v959
        %996 = vst.msk [vmem:[%s187 + $0xc8] sm:$0xff] %vm982, %v961
        %997 = vst.msk [vmem:[%s187 + $0xe0] sm:$0xff] %vm982, %v963
        %998 = vst.msk [vmem:[%s187 + $0xe8] sm:$0xff] %vm982, %v965
        %s999 = scalar_lea.vmem %s187, 16 [#allocation2]
        %1000 = vst.msk [vmem:[%s999] sm:$0xff] %vm982, %v902
        %1001 = vst.msk [vmem:[%s999 + $0x8] sm:$0xff] %vm982, %v903
        %1002 = vst.msk [vmem:[%s999 + $0x20] sm:$0xff] %vm982, %v904
        %1003 = vst.msk [vmem:[%s999 + $0x28] sm:$0xff] %vm982, %v905
        %1004 = vst.msk [vmem:[%s999 + $0x40] sm:$0xff] %vm982, %v906
        %1005 = vst.msk [vmem:[%s999 + $0x48] sm:$0xff] %vm982, %v907
        %1006 = vst.msk [vmem:[%s999 + $0x60] sm:$0xff] %vm982, %v908
        %1007 = vst.msk [vmem:[%s999 + $0x68] sm:$0xff] %vm982, %v909
        %1008 = vst.msk [vmem:[%s999 + $0x80] sm:$0xff] %vm982, %v910
        %1009 = vst.msk [vmem:[%s999 + $0x88] sm:$0xff] %vm982, %v911
        %1010 = vst.msk [vmem:[%s999 + $0xa0] sm:$0xff] %vm982, %v912
        %1011 = vst.msk [vmem:[%s999 + $0xa8] sm:$0xff] %vm982, %v913
        %1012 = vst.msk [vmem:[%s999 + $0xc0] sm:$0xff] %vm982, %v914
        %1013 = vst.msk [vmem:[%s999 + $0xc8] sm:$0xff] %vm982, %v915
        %1014 = vst.msk [vmem:[%s999 + $0xe0] sm:$0xff] %vm982, %v916
        %1015 = vst.msk [vmem:[%s999 + $0xe8] sm:$0xff] %vm982, %v917
        %s1016 = sand.u32 %s109, 1
        %s1017 = scalar_lea.sflag [#allocation3], %s1016
        %s1018 = sand.u32 %s109, 1
        %s1019 = smul.addr %s1018, 256
        %s1020 = scalar_lea.vmem [#allocation2], %s1019
        // Predicated region
        $region33: #{tpu_custom_call.1} parent=31 // pred_check
          %p1021 = pneg %p119
        $region34: #{tpu_custom_call.1} parent=31 // pred_check_branch
          %1023 = sbr.rel (%p1021) target = $region36
        $region35: #{tpu_custom_call.1} parent=31 // pred_region
          %s1024 = smul.u32 8, %s22
          %s1026 = ssub.s32 4096, 4096
          %1027 = vsyncadd %s1017, %s1026
          %s1028 = smul.addr %s1024, 4
          %s1029 = smul.addr %s21, 64
          %s1030 = sadd.s32 %s1028, %s1029
          %s1031 = smul.addr %s1030, 128
          %s1032 = scalar_lea.hbm %s3, %s1031
          %s1033 = sshll.u32 %s1020, 4
          %s1034 = int_to_ptr.vmem [resolvable:$true] %s1033
          %1039 = dma.vmem_to_hbm [thread:$0]  %s1034, 4096, %s1032, %s1017, 128, 128, 8
        $region36: #{tpu_custom_call.1} parent=31 // pred_fallthru
          _
      $region32: #{tpu_custom_call.1} parent=5 // pred_fallthru
        _
      %p1040 = scmp.le.s32.totalorder 2, %s12
      // Predicated region
      $region37: #{tpu_custom_call.1} parent=5 // pred_check
        %p1041 = pneg %p1040
      $region38: #{tpu_custom_call.1} parent=5 // pred_check_branch
        %1043 = sbr.rel (%p1041) target = $region40
      $region39: #{tpu_custom_call.1} parent=5 // pred_region
        %s1044 = ssub.s32 %s12, 2
        // Predicated region
        $region41: #{tpu_custom_call.1} parent=39 // pred_check
          %p1045 = pneg %p125
        $region42: #{tpu_custom_call.1} parent=39 // pred_check_branch
          %1047 = sbr.rel (%p1045) target = $region44
        $region43: #{tpu_custom_call.1} parent=39 // pred_region
          %s1048 = sand.u32 %s110, 1
          %s1049 = scalar_lea.sflag [#allocation3], %s1048
          %s1050 = sand.u32 %s110, 1
          %s1051 = smul.addr %s1050, 256
          %s1052 = scalar_lea.vmem [#allocation2], %s1051
          %1053 = dma.done %s1049, 4096
        $region44: #{tpu_custom_call.1} parent=39 // pred_fallthru
          _
      $region40: #{tpu_custom_call.1} parent=5 // pred_fallthru
        _
    $region6: #{tpu_custom_call.1} parent=1 // loop_footer
      %s16 = sadd.s32 1, %s12
    $region7: #{tpu_custom_call.1} parent=1 // loop_footer_branch
      %11 = sbr.rel target = $region3
    $region8: #{tpu_custom_call.1} parent=1 // loop_exit
      _
    %1054 = vsyncpa [#allocation3], 1
    %s1055 = scalar_lea.sflag [#allocation3], 1
    %1056 = vsyncpa %s1055, 1

</llo_original>
